<compile_context>
chip_gen: v7x
topology: tpu7x:2x2x1
jax: 0.10.0
libtpu: 0.0.40
codegen_flags: <defaults>
</compile_context>

<pallas_src>
import functools

import jax
import jax.numpy as jnp
from jax.experimental import pallas as pl
from jax.experimental.pallas import tpu as pltpu


def _rope_kernel(inv_freq_ref, pos_ref, q_ref, k_ref, q_out_ref, k_out_ref, *,
                 half):
    # inv_freq_ref : (1, D/2)      f32 inverse frequencies
    # pos_ref      : (tS, 1)       int32 absolute positions for this seq tile
    # q_ref        : (Hq, tS, D)   query heads of one batch element
    # k_ref        : (Hk, tS, D)   key heads of one batch element
    pos = pos_ref[...].astype(jnp.float32)                 # (tS, 1)
    angle = pos * inv_freq_ref[...]                        # (tS, D/2)
    cos_h = jnp.cos(angle)                                 # half-width trig (EUP)
    sin_h = jnp.sin(angle)

    cdt = q_out_ref.dtype
    # Full-width cos and *sign-folded* sin, computed once per grid step and
    # shared by every query & key head of this block.  Folding the rotate_half
    # sign into sin makes the per-head rotate_half a pure (un-negated) swap.
    cos = jnp.concatenate([cos_h, cos_h], axis=-1)[None].astype(cdt)     # (1,tS,D)
    sin_s = jnp.concatenate([-sin_h, sin_h], axis=-1)[None].astype(cdt)  # (1,tS,D)

    def _apply(x_ref, o_ref):
        x = x_ref[...]                                                   # (H,tS,D)
        x_swap = jnp.concatenate([x[..., half:], x[..., :half]], axis=-1)
        # out[..., :h] = x1*cos - x2*sin ; out[..., h:] = x2*cos + x1*sin
        o_ref[...] = x * cos + x_swap * sin_s

    _apply(q_ref, q_out_ref)
    _apply(k_ref, k_out_ref)


def _pick_seq_tile(S, Hq, Hk, D, itemsize, budget_bytes=12 << 20):
    """Largest multiple-of-8 divisor of S whose double-buffered in+out VMEM
    footprint stays within budget; falls back to a single full-sequence block
    for irregular S."""
    def footprint(t):
        # q+k blocks, in + out, double-buffered by the Pallas pipeline.
        return (Hq + Hk) * t * D * itemsize * 2 * 2

    candidates = [c for c in (1024, 512, 256, 128, 64, 32, 16, 8) if S % c == 0]
    for c in candidates:                      # largest first
        if footprint(c) <= budget_bytes:
            return c
    if candidates:
        return candidates[-1]
    return S


def falcon_rotary_embedding(query, key, past_key_values_length, position_ids,
                            *, base=10000, seq_tile=None):
    """query: (B*Hq, S, D); key: (B*Hk, S, D); position_ids: (B, S) int.

    `past_key_values_length` is accepted for API parity with the torch module
    but is unused: positions come directly from `position_ids` (torch only
    uses it to size its host-side cos/sin cache, which is replaced here by
    on-the-fly in-kernel computation).
    """
    del past_key_values_length
    Bq, S, D = query.shape
    Bk, Sk, Dk = key.shape
    B, Sp = position_ids.shape
    assert S == Sk == Sp and D == Dk and D % 2 == 0
    assert Bq % B == 0 and Bk % B == 0
    assert query.dtype == key.dtype
    Hq, Hk = Bq // B, Bk // B
    half = D // 2

    if seq_tile is None:
        seq_tile = _pick_seq_tile(S, Hq, Hk, D, query.dtype.itemsize)
    assert S % seq_tile == 0

    inv_freq = (1.0 / (base ** (jnp.arange(0, D, 2, dtype=jnp.float32) / D))
                )[None, :]                                   # (1, D/2)

    # repeat_interleave semantics of the torch module: row i of query belongs
    # to batch i // Hq  ->  free reshape to (B, H, S, D).
    q4 = query.reshape(B, Hq, S, D)
    k4 = key.reshape(B, Hk, S, D)
    pos3 = position_ids.astype(jnp.int32).reshape(B, S, 1)

    grid = (B, S // seq_tile)

    q_out, k_out = pl.pallas_call(
        functools.partial(_rope_kernel, half=half),
        out_shape=(jax.ShapeDtypeStruct((B, Hq, S, D), query.dtype),
                   jax.ShapeDtypeStruct((B, Hk, S, D), key.dtype)),
        grid_spec=pltpu.PrefetchScalarGridSpec(
            num_scalar_prefetch=0,
            grid=grid,
            in_specs=[
                pl.BlockSpec((1, half), lambda b, s: (0, 0)),                # inv_freq
                pl.BlockSpec((None, seq_tile, 1), lambda b, s: (b, s, 0)),   # positions
                pl.BlockSpec((None, Hq, seq_tile, D), lambda b, s: (b, 0, s, 0)),  # q
                pl.BlockSpec((None, Hk, seq_tile, D), lambda b, s: (b, 0, s, 0)),  # k
            ],
            out_specs=(
                pl.BlockSpec((None, Hq, seq_tile, D), lambda b, s: (b, 0, s, 0)),
                pl.BlockSpec((None, Hk, seq_tile, D), lambda b, s: (b, 0, s, 0)),
            ),
        ),
        compiler_params=pltpu.CompilerParams(
            dimension_semantics=("parallel", "parallel"),
            vmem_limit_bytes=32 << 20),
    )(inv_freq, pos3, q4, k4)

    return q_out.reshape(Bq, S, D), k_out.reshape(Bk, S, D)


# ----------------------------- pure-JAX reference ---------------------------

def _rotate_half(x):
    h = x.shape[-1] // 2
    return jnp.concatenate([-x[..., h:], x[..., :h]], axis=-1)


def _reference(query, key, position_ids, base=10000):
    D = query.shape[-1]
    B = position_ids.shape[0]
    inv_freq = 1.0 / (base ** (jnp.arange(0, D, 2, dtype=jnp.float32) / D))
    freqs = position_ids.astype(jnp.float32)[..., None] * inv_freq   # (B, S, D/2)
    emb = jnp.concatenate([freqs, freqs], axis=-1)                   # (B, S, D)
    cos = jnp.cos(emb).astype(query.dtype)
    sin = jnp.sin(emb).astype(query.dtype)
    qf = query.shape[0] // B
    kf = key.shape[0] // B
    q_cos = jnp.repeat(cos, qf, axis=0)
    q_sin = jnp.repeat(sin, qf, axis=0)
    k_cos = jnp.repeat(cos, kf, axis=0)
    k_sin = jnp.repeat(sin, kf, axis=0)
    return (query * q_cos + _rotate_half(query) * q_sin,
            key * k_cos + _rotate_half(key) * k_sin)


if __name__ == "__main__":
    # Small Falcon-like config: multi-query attention (many q heads, 1 kv head).
    B, S, D = 2, 8, 32        # batch, seq_len, head_dim
    Hq, Hk = 4, 1             # q heads per batch, kv heads per batch
    past = 3

    root = jax.random.PRNGKey(0)
    k_q, k_k = jax.random.split(root)
    query = jax.random.normal(k_q, (B * Hq, S, D), dtype=jnp.float32)
    key_t = jax.random.normal(k_k, (B * Hk, S, D), dtype=jnp.float32)
    position_ids = jnp.stack([jnp.arange(past, past + S),
                              jnp.arange(0, S)]).astype(jnp.int32)   # (B, S)

    q_rot, k_rot = falcon_rotary_embedding(query, key_t, past, position_ids)
    q_rot, k_rot = jax.block_until_ready((q_rot, k_rot))

    q_ref, k_ref = _reference(query, key_t, position_ids)
    assert q_rot.shape == query.shape and k_rot.shape == key_t.shape
    assert jnp.allclose(q_rot, q_ref, atol=1e-4, rtol=1e-4), "query mismatch"
    assert jnp.allclose(k_rot, k_ref, atol=1e-4, rtol=1e-4), "key mismatch"

    print("KERNEL_OK")
</pallas_src>

<mosaic_0001>
module attributes {stable_mosaic.version = 11 : i64} {
  func.func @_rope_kernel(%arg0: i32, %arg1: i32, %arg2: memref<1x16xf32, #tpu.memory_space<vmem>>, %arg3: memref<1x8x1xi32, #tpu.memory_space<vmem>>, %arg4: memref<1x4x8x32xf32, #tpu.memory_space<vmem>>, %arg5: memref<1x1x8x32xf32, #tpu.memory_space<vmem>>, %arg6: memref<1x4x8x32xf32, #tpu.memory_space<vmem>>, %arg7: memref<1x1x8x32xf32, #tpu.memory_space<vmem>>) attributes {dimension_semantics = [#tpu.dimension_semantics<parallel>, #tpu.dimension_semantics<parallel>], iteration_bounds = array<i64: 2, 1>, scalar_prefetch = 0 : i64, scratch_operands = 0 : i64, tpu.core_type = #tpu.core_type<tc>, window_params = [{pipeline_mode = #tpu.pipeline_mode<synchronous>, transform_indices = @transform_0, window_bounds = array<i64: 1, 16>}, {transform_indices = @transform_1, window_bounds = array<i64: 1, 8, 1>}, {transform_indices = @transform_2, window_bounds = array<i64: 1, 4, 8, 32>}, {transform_indices = @transform_3, window_bounds = array<i64: 1, 1, 8, 32>}, {transform_indices = @transform_4, window_bounds = array<i64: 1, 4, 8, 32>}, {transform_indices = @transform_5, window_bounds = array<i64: 1, 1, 8, 32>}]} {
    %c0 = arith.constant 0 : index
    %c0_0 = arith.constant 0 : index
    %c0_1 = arith.constant 0 : index
    %0 = vector.load %arg3[%c0, %c0_0, %c0_1] : memref<1x8x1xi32, #tpu.memory_space<vmem>>, vector<1x8x1xi32>
    %1 = vector.shape_cast %0 : vector<1x8x1xi32> to vector<8x1xi32>
    %2 = arith.sitofp %1 : vector<8x1xi32> to vector<8x1xf32>
    %c0_2 = arith.constant 0 : index
    %c0_3 = arith.constant 0 : index
    %3 = vector.load %arg2[%c0_2, %c0_3] : memref<1x16xf32, #tpu.memory_space<vmem>>, vector<1x16xf32>
    %4 = vector.broadcast %2 : vector<8x1xf32> to vector<8x16xf32>
    %5 = vector.broadcast %3 : vector<1x16xf32> to vector<8x16xf32>
    %6 = arith.mulf %4, %5 : vector<8x16xf32>
    %7 = math.cos %6 : vector<8x16xf32>
    %8 = math.sin %6 : vector<8x16xf32>
    %9 = tpu.concatenate %7, %7 in 1 : vector<8x16xf32>, vector<8x16xf32> -> vector<8x32xf32>
    %10 = vector.shape_cast %9 : vector<8x32xf32> to vector<1x8x32xf32>
    %cst = arith.constant 0.000000e+00 : f32
    %11 = vector.broadcast %cst : f32 to vector<8x16xf32>
    %12 = arith.subf %11, %8 : vector<8x16xf32>
    %13 = tpu.concatenate %12, %8 in 1 : vector<8x16xf32>, vector<8x16xf32> -> vector<8x32xf32>
    %14 = vector.shape_cast %13 : vector<8x32xf32> to vector<1x8x32xf32>
    %c0_4 = arith.constant 0 : index
    %c0_5 = arith.constant 0 : index
    %c0_6 = arith.constant 0 : index
    %c0_7 = arith.constant 0 : index
    %15 = vector.load %arg4[%c0_4, %c0_5, %c0_6, %c0_7] : memref<1x4x8x32xf32, #tpu.memory_space<vmem>>, vector<1x4x8x32xf32>
    %16 = vector.shape_cast %15 : vector<1x4x8x32xf32> to vector<4x8x32xf32>
    %17 = vector.extract_strided_slice %16 {offsets = [0, 0, 16], sizes = [4, 8, 16], strides = [1, 1, 1]} : vector<4x8x32xf32> to vector<4x8x16xf32>
    %18 = vector.extract_strided_slice %16 {offsets = [0, 0, 0], sizes = [4, 8, 16], strides = [1, 1, 1]} : vector<4x8x32xf32> to vector<4x8x16xf32>
    %19 = tpu.concatenate %17, %18 in 2 : vector<4x8x16xf32>, vector<4x8x16xf32> -> vector<4x8x32xf32>
    %20 = vector.broadcast %10 : vector<1x8x32xf32> to vector<4x8x32xf32>
    %21 = arith.mulf %16, %20 : vector<4x8x32xf32>
    %22 = vector.broadcast %14 : vector<1x8x32xf32> to vector<4x8x32xf32>
    %23 = arith.mulf %19, %22 : vector<4x8x32xf32>
    %24 = arith.addf %21, %23 : vector<4x8x32xf32>
    %c0_8 = arith.constant 0 : index
    %c0_9 = arith.constant 0 : index
    %c0_10 = arith.constant 0 : index
    %c0_11 = arith.constant 0 : index
    %25 = vector.load %arg6[%c0_8, %c0_9, %c0_10, %c0_11] : memref<1x4x8x32xf32, #tpu.memory_space<vmem>>, vector<1x4x8x32xf32>
    %26 = vector.shape_cast %25 : vector<1x4x8x32xf32> to vector<4x8x32xf32>
    %27 = vector.shape_cast %24 : vector<4x8x32xf32> to vector<1x4x8x32xf32>
    tpu.vector_store %arg6[%c0_8, %c0_9, %c0_10, %c0_11], %27 {strides = array<i32>} : memref<1x4x8x32xf32, #tpu.memory_space<vmem>>, vector<1x4x8x32xf32>,
    %c0_12 = arith.constant 0 : index
    %c0_13 = arith.constant 0 : index
    %c0_14 = arith.constant 0 : index
    %c0_15 = arith.constant 0 : index
    %28 = vector.load %arg5[%c0_12, %c0_13, %c0_14, %c0_15] : memref<1x1x8x32xf32, #tpu.memory_space<vmem>>, vector<1x1x8x32xf32>
    %29 = vector.shape_cast %28 : vector<1x1x8x32xf32> to vector<1x8x32xf32>
    %30 = vector.extract_strided_slice %29 {offsets = [0, 0, 16], sizes = [1, 8, 16], strides = [1, 1, 1]} : vector<1x8x32xf32> to vector<1x8x16xf32>
    %31 = vector.extract_strided_slice %29 {offsets = [0, 0, 0], sizes = [1, 8, 16], strides = [1, 1, 1]} : vector<1x8x32xf32> to vector<1x8x16xf32>
    %32 = tpu.concatenate %30, %31 in 2 : vector<1x8x16xf32>, vector<1x8x16xf32> -> vector<1x8x32xf32>
    %33 = arith.mulf %29, %10 : vector<1x8x32xf32>
    %34 = arith.mulf %32, %14 : vector<1x8x32xf32>
    %35 = arith.addf %33, %34 : vector<1x8x32xf32>
    %c0_16 = arith.constant 0 : index
    %c0_17 = arith.constant 0 : index
    %c0_18 = arith.constant 0 : index
    %c0_19 = arith.constant 0 : index
    %36 = vector.load %arg7[%c0_16, %c0_17, %c0_18, %c0_19] : memref<1x1x8x32xf32, #tpu.memory_space<vmem>>, vector<1x1x8x32xf32>
    %37 = vector.shape_cast %36 : vector<1x1x8x32xf32> to vector<1x8x32xf32>
    %38 = vector.shape_cast %35 : vector<1x8x32xf32> to vector<1x1x8x32xf32>
    tpu.vector_store %arg7[%c0_16, %c0_17, %c0_18, %c0_19], %38 {strides = array<i32>} : memref<1x1x8x32xf32, #tpu.memory_space<vmem>>, vector<1x1x8x32xf32>,
    return
  }
  func.func @transform_0(%arg0: i32, %arg1: i32) -> (i32, i32) {
    %c0_i32 = arith.constant 0 : i32
    %c0_i32_0 = arith.constant 0 : i32
    %c0_i32_1 = arith.constant 0 : i32
    return %c0_i32, %c0_i32_0 : i32, i32
  }
  func.func @transform_1(%arg0: i32, %arg1: i32) -> (i32, i32, i32) {
    %c0_i32 = arith.constant 0 : i32
    %c0_i32_0 = arith.constant 0 : i32
    return %arg0, %arg1, %c0_i32 : i32, i32, i32
  }
  func.func @transform_2(%arg0: i32, %arg1: i32) -> (i32, i32, i32, i32) {
    %c0_i32 = arith.constant 0 : i32
    %c0_i32_0 = arith.constant 0 : i32
    %c0_i32_1 = arith.constant 0 : i32
    return %arg0, %c0_i32, %arg1, %c0_i32_0 : i32, i32, i32, i32
  }
  func.func @transform_3(%arg0: i32, %arg1: i32) -> (i32, i32, i32, i32) {
    %c0_i32 = arith.constant 0 : i32
    %c0_i32_0 = arith.constant 0 : i32
    %c0_i32_1 = arith.constant 0 : i32
    return %arg0, %c0_i32, %arg1, %c0_i32_0 : i32, i32, i32, i32
  }
  func.func @transform_4(%arg0: i32, %arg1: i32) -> (i32, i32, i32, i32) {
    %c0_i32 = arith.constant 0 : i32
    %c0_i32_0 = arith.constant 0 : i32
    %c0_i32_1 = arith.constant 0 : i32
    return %arg0, %c0_i32, %arg1, %c0_i32_0 : i32, i32, i32, i32
  }
  func.func @transform_5(%arg0: i32, %arg1: i32) -> (i32, i32, i32, i32) {
    %c0_i32 = arith.constant 0 : i32
    %c0_i32_0 = arith.constant 0 : i32
    %c0_i32_1 = arith.constant 0 : i32
    return %arg0, %c0_i32, %arg1, %c0_i32_0 : i32, i32, i32, i32
  }
}

</mosaic_0001>

<llo_original>
// kernel: tpu_custom_call.1
$region0: #{tpu_custom_call.1}
  #allocation0 [shape = 'u32[]', space=smem, size = 0x4, offset = 0x4, fixed_abs, tag = 'smem constant byte address 0x4 - core index']
  #allocation1 [shape = 'u32[144,128]{1,0:T(1,128)}', space=vmem, size = 0x12000, scoped, tag = 'internal scratch']
  %s0 = inlined_call_operand.vmem [shape: f32[1,16], index: 0, kind: input, shape index: {}]
  %s1 = inlined_call_operand.vmem [shape: s32[2,8,1], index: 1, kind: input, shape index: {}]
  %s2 = inlined_call_operand.hbm [shape: f32[2,4,8,32], index: 2, kind: input, shape index: {}]
  %s3 = inlined_call_operand.vmem [shape: f32[2,1,8,32], index: 3, kind: input, shape index: {}]
  %s4 = inlined_call_operand.hbm [shape: f32[2,4,8,32], index: 4, kind: output, shape index: {0}]
  %s5 = inlined_call_operand.hbm [shape: f32[2,1,8,32], index: 5, kind: output, shape index: {1}]
  %6 = xla_tuple %s4, %s5
  %s7 = sld [smem:[#allocation0]]
  $region61: #{tpu_custom_call.1} parent=0
    _
  %s9 = ssub.s32 1, %s7
  %s10 = scalar_select 0, %s9, %s7
  $region1: #{tpu_custom_call.1} parent=0
    #allocation2 [shape = 'u8[32768]{0}', space=vmem, size = 0x8000, scoped, tag = 'input window, operand 2']
    #allocation3 [shape = 's32[2]{0}', space=sflag, size = 0x8, scoped, tag = 'scoped memory for tpu_custom_call.1']
    #allocation4 [shape = 's32[2]{0}', space=sflag, size = 0x8, scoped, tag = 'scoped memory for tpu_custom_call.1']
    #allocation5 [shape = 'u8[32768]{0}', space=vmem, size = 0x8000, scoped, tag = 'output window, operand 0']
    #allocation6 [shape = 'u8[8192]{0}', space=vmem, size = 0x2000, scoped, tag = 'output window, operand 1']
    #allocation7 [shape = 's32[2]{0}', space=sflag, size = 0x8, scoped, tag = 'scoped memory for tpu_custom_call.1']
    %11 = vsyncpa [#allocation3], 0
    %s12 = scalar_lea.sflag [#allocation3], 1
    %13 = vsyncpa %s12, 0
    %14 = vsyncpa [#allocation4], 0
    %s15 = scalar_lea.sflag [#allocation4], 1
    %16 = vsyncpa %s15, 0
    %17 = vsyncpa [#allocation7], 0
    %s18 = scalar_lea.sflag [#allocation7], 1
    %19 = vsyncpa %s18, 0
    loop: start=0, step=1, limit=4
    $region2: #{tpu_custom_call.1} parent=1 // loop_pre_header
      _
    $region3: #{tpu_custom_call.1} parent=1 // loop_header
      %s21 = sphi 0, %s25
      %p22 = scmp.ge.s32.totalorder %s21, 4
      %s28 = sphi 0, %s40
      %s29 = sphi 0, %s36
      %s30 = sphi 0, %s28
      %s31 = sphi 0, %s29
      %s32 = sphi 0, %s30
      %s33 = sphi 0, %s31
      %s41 = sphi 0, %s41
      %s43 = sphi 0, %s41
      %s44 = sphi 0, %s43
      %s58 = sphi 0, %s44
      %s66 = sphi 0, %s68
      %s69 = sphi 0, %s66
      %s70 = sphi 0, %s69
      %s86 = sphi 0, %s70
      %s94 = sphi 0, %s96
      %s97 = sphi 0, %s94
      %s98 = sphi 0, %s97
      %s114 = sphi 0, %s98
      %s122 = sphi 0, %s124
      %s125 = sphi 0, %s122
      %s126 = sphi 0, %s125
      %s142 = sphi 0, %s126
      %s150 = sphi 0, %s152
      %s153 = sphi 0, %s150
      %s154 = sphi 0, %s153
      %s170 = sphi 0, %s154
      %s178 = sphi 0, %s180
      %s181 = sphi 0, %s178
      %s182 = sphi 0, %s181
      %s198 = sphi 0, %s182
    $region4: #{tpu_custom_call.1} parent=1 // loop_header_branch
      %24 = sbr.rel (%p22) target = $region8
    $region5: #{tpu_custom_call.1} parent=1 // loop_body
      %s26 = ssub.s32 %s21, 1
      %s27 = ssub.s32 %s21, 2
      %s34 = sadd.s32 1, %s29
      %p35 = scmp.ge.s32.totalorder %s34, 1
      %s36 = scalar_select %p35, 0, %s34
      %s37 = sadd.s32 1, %s28
      %s38 = scalar_select %p35, %s37, %s28
      %p39 = scmp.ge.s32.totalorder %s38, 2
      %s40 = scalar_select %p39, 0, %s38
      %s42 = sadd.s32 %s41, 1
      %p45 = scmp.eq.s32.totalorder %s21, 1
      %p46 = scmp.ne.s32.totalorder %s41, %s43
      %p47 = scmp.eq.s32.totalorder %s21, 0
      %p48 = por %p46, %p47
      %p49 = scmp.ne.s32.totalorder %s41, %s43
      %p50 = scmp.eq.s32.totalorder %s26, 1
      %p51 = por %p49, %p50
      %p52 = scmp.ne.s32.totalorder %s43, %s44
      %p53 = scmp.eq.s32.totalorder %s26, 0
      %p54 = por %p52, %p53
      %p55 = scmp.ne.s32.totalorder %s43, %s44
      %p56 = scmp.eq.s32.totalorder %s27, 1
      %p57 = por %p55, %p56
      %p59 = scmp.ne.s32.totalorder %s44, %s58
      %p60 = scmp.eq.s32.totalorder %s27, 0
      %p61 = por %p59, %p60
      %s62 = ssub.s32 %s28, %s40
      %s63 = ssub.s32 %s29, %s36
      %s64 = sor.u32 %s62, %s63
      %p65 = scmp.eq.s32.totalorder %s64, 0
      %s67 = sadd.s32 %s66, 1
      %s68 = scalar_select %p65, %s66, %s67
      %p71 = pneg %p65
      %p72 = scmp.eq.s32.totalorder %s21, 1
      %p73 = por %p71, %p72
      %p74 = scmp.ne.s32.totalorder %s66, %s69
      %p75 = scmp.eq.s32.totalorder %s21, 0
      %p76 = por %p74, %p75
      %p77 = scmp.ne.s32.totalorder %s66, %s69
      %p78 = scmp.eq.s32.totalorder %s26, 1
      %p79 = por %p77, %p78
      %p80 = scmp.ne.s32.totalorder %s69, %s70
      %p81 = scmp.eq.s32.totalorder %s26, 0
      %p82 = por %p80, %p81
      %p83 = scmp.ne.s32.totalorder %s69, %s70
      %p84 = scmp.eq.s32.totalorder %s27, 1
      %p85 = por %p83, %p84
      %p87 = scmp.ne.s32.totalorder %s70, %s86
      %p88 = scmp.eq.s32.totalorder %s27, 0
      %p89 = por %p87, %p88
      %s90 = ssub.s32 %s28, %s40
      %s91 = ssub.s32 %s29, %s36
      %s92 = sor.u32 %s90, %s91
      %p93 = scmp.eq.s32.totalorder %s92, 0
      %s95 = sadd.s32 %s94, 1
      %s96 = scalar_select %p93, %s94, %s95
      %p99 = pneg %p93
      %p100 = scmp.eq.s32.totalorder %s21, 1
      %p101 = por %p99, %p100
      %p102 = scmp.ne.s32.totalorder %s94, %s97
      %p103 = scmp.eq.s32.totalorder %s21, 0
      %p104 = por %p102, %p103
      %p105 = scmp.ne.s32.totalorder %s94, %s97
      %p106 = scmp.eq.s32.totalorder %s26, 1
      %p107 = por %p105, %p106
      %p108 = scmp.ne.s32.totalorder %s97, %s98
      %p109 = scmp.eq.s32.totalorder %s26, 0
      %p110 = por %p108, %p109
      %p111 = scmp.ne.s32.totalorder %s97, %s98
      %p112 = scmp.eq.s32.totalorder %s27, 1
      %p113 = por %p111, %p112
      %p115 = scmp.ne.s32.totalorder %s98, %s114
      %p116 = scmp.eq.s32.totalorder %s27, 0
      %p117 = por %p115, %p116
      %s118 = ssub.s32 %s28, %s40
      %s119 = ssub.s32 %s29, %s36
      %s120 = sor.u32 %s118, %s119
      %p121 = scmp.eq.s32.totalorder %s120, 0
      %s123 = sadd.s32 %s122, 1
      %s124 = scalar_select %p121, %s122, %s123
      %p127 = pneg %p121
      %p128 = scmp.eq.s32.totalorder %s21, 1
      %p129 = por %p127, %p128
      %p130 = scmp.ne.s32.totalorder %s122, %s125
      %p131 = scmp.eq.s32.totalorder %s21, 0
      %p132 = por %p130, %p131
      %p133 = scmp.ne.s32.totalorder %s122, %s125
      %p134 = scmp.eq.s32.totalorder %s26, 1
      %p135 = por %p133, %p134
      %p136 = scmp.ne.s32.totalorder %s125, %s126
      %p137 = scmp.eq.s32.totalorder %s26, 0
      %p138 = por %p136, %p137
      %p139 = scmp.ne.s32.totalorder %s125, %s126
      %p140 = scmp.eq.s32.totalorder %s27, 1
      %p141 = por %p139, %p140
      %p143 = scmp.ne.s32.totalorder %s126, %s142
      %p144 = scmp.eq.s32.totalorder %s27, 0
      %p145 = por %p143, %p144
      %s146 = ssub.s32 %s28, %s40
      %s147 = ssub.s32 %s29, %s36
      %s148 = sor.u32 %s146, %s147
      %p149 = scmp.eq.s32.totalorder %s148, 0
      %s151 = sadd.s32 %s150, 1
      %s152 = scalar_select %p149, %s150, %s151
      %p155 = pneg %p149
      %p156 = scmp.eq.s32.totalorder %s21, 1
      %p157 = por %p155, %p156
      %p158 = scmp.ne.s32.totalorder %s150, %s153
      %p159 = scmp.eq.s32.totalorder %s21, 0
      %p160 = por %p158, %p159
      %p161 = scmp.ne.s32.totalorder %s150, %s153
      %p162 = scmp.eq.s32.totalorder %s26, 1
      %p163 = por %p161, %p162
      %p164 = scmp.ne.s32.totalorder %s153, %s154
      %p165 = scmp.eq.s32.totalorder %s26, 0
      %p166 = por %p164, %p165
      %p167 = scmp.ne.s32.totalorder %s153, %s154
      %p168 = scmp.eq.s32.totalorder %s27, 1
      %p169 = por %p167, %p168
      %p171 = scmp.ne.s32.totalorder %s154, %s170
      %p172 = scmp.eq.s32.totalorder %s27, 0
      %p173 = por %p171, %p172
      %s174 = ssub.s32 %s28, %s40
      %s175 = ssub.s32 %s29, %s36
      %s176 = sor.u32 %s174, %s175
      %p177 = scmp.eq.s32.totalorder %s176, 0
      %s179 = sadd.s32 %s178, 1
      %s180 = scalar_select %p177, %s178, %s179
      %p183 = pneg %p177
      %p184 = scmp.eq.s32.totalorder %s21, 1
      %p185 = por %p183, %p184
      %p186 = scmp.ne.s32.totalorder %s178, %s181
      %p187 = scmp.eq.s32.totalorder %s21, 0
      %p188 = por %p186, %p187
      %p189 = scmp.ne.s32.totalorder %s178, %s181
      %p190 = scmp.eq.s32.totalorder %s26, 1
      %p191 = por %p189, %p190
      %p192 = scmp.ne.s32.totalorder %s181, %s182
      %p193 = scmp.eq.s32.totalorder %s26, 0
      %p194 = por %p192, %p193
      %p195 = scmp.ne.s32.totalorder %s181, %s182
      %p196 = scmp.eq.s32.totalorder %s27, 1
      %p197 = por %p195, %p196
      %p199 = scmp.ne.s32.totalorder %s182, %s198
      %p200 = scmp.eq.s32.totalorder %s27, 0
      %p201 = por %p199, %p200
      %p202 = scmp.le.s32.totalorder 1, %s21
      %p203 = scmp.lt.s32.totalorder %s21, 3
      %p204 = pnand %p202, %p203
      %p205 = pneg %p204
      // Predicated region
      $region9: #{tpu_custom_call.1} parent=5 // pred_check
        _
      $region10: #{tpu_custom_call.1} parent=5 // pred_check_branch
        %207 = sbr.rel (%p204) target = $region12
      $region11: #{tpu_custom_call.1} parent=5 // pred_region
        %s208 = ssub.s32 %s21, 1
        // Predicated region
        $region13: #{tpu_custom_call.1} parent=11 // pred_check
          %p209 = pneg %p54
        $region14: #{tpu_custom_call.1} parent=11 // pred_check_branch
          %211 = sbr.rel (%p209) target = $region16
        $region15: #{tpu_custom_call.1} parent=11 // pred_region
          _
        $region16: #{tpu_custom_call.1} parent=11 // pred_fallthru
          _
      $region12: #{tpu_custom_call.1} parent=5 // pred_fallthru
        _
      %p212 = scmp.lt.s32.totalorder %s21, 2
      // Predicated region
      $region17: #{tpu_custom_call.1} parent=5 // pred_check
        %p213 = pneg %p212
      $region18: #{tpu_custom_call.1} parent=5 // pred_check_branch
        %215 = sbr.rel (%p213) target = $region20
      $region19: #{tpu_custom_call.1} parent=5 // pred_region
        // Predicated region
        $region21: #{tpu_custom_call.1} parent=19 // pred_check
          %p216 = pneg %p76
        $region22: #{tpu_custom_call.1} parent=19 // pred_check_branch
          %218 = sbr.rel (%p216) target = $region24
        $region23: #{tpu_custom_call.1} parent=19 // pred_region
          %p219 = scmp.lt.s32.totalorder %s28, 1
          %s220 = scalar_select %p219, %s28, 1
          %p221 = scmp.lt.s32.totalorder %s29, 0
          %s222 = scalar_select %p221, %s29, 0
          %s223 = sadd.s32 %s222, %s220
          %s224 = smul.addr %s223, 8
          %s225 = scalar_lea.vmem %s1, %s224
        $region24: #{tpu_custom_call.1} parent=19 // pred_fallthru
          _
        // Predicated region
        $region25: #{tpu_custom_call.1} parent=19 // pred_check
          %p226 = pneg %p104
        $region26: #{tpu_custom_call.1} parent=19 // pred_check_branch
          %228 = sbr.rel (%p226) target = $region28
        $region27: #{tpu_custom_call.1} parent=19 // pred_region
          %s229 = sand.u32 %s94, 1
          %s230 = scalar_lea.sflag [#allocation3], %s229
          %s231 = sand.u32 %s94, 1
          %s232 = smul.addr %s231, 32
          %s233 = scalar_lea.vmem [#allocation2], %s232
          %s235 = ssub.s32 512, 512
          %236 = vsyncadd %s230, %s235
          %s237 = smul.addr %s28, 4
          %s238 = sadd.s32 %s29, %s237
          %s239 = smul.addr %s238, 128
          %s240 = scalar_lea.hbm %s2, %s239
          %s241 = sshll.u32 %s233, 4
          %s242 = int_to_ptr.vmem [resolvable:$true] %s241
          %247 = dma.hbm_to_vmem [thread:$0]  %s240, 512, %s242, %s230, 128, 128, 8
        $region28: #{tpu_custom_call.1} parent=19 // pred_fallthru
          _
        // Predicated region
        $region29: #{tpu_custom_call.1} parent=19 // pred_check
          %p248 = pneg %p132
        $region30: #{tpu_custom_call.1} parent=19 // pred_check_branch
          %250 = sbr.rel (%p248) target = $region32
        $region31: #{tpu_custom_call.1} parent=19 // pred_region
          %p251 = scmp.lt.s32.totalorder %s28, 1
          %s252 = scalar_select %p251, %s28, 1
          %p253 = scmp.lt.s32.totalorder %s29, 0
          %s254 = scalar_select %p253, %s29, 0
          %s255 = sadd.s32 %s254, %s252
          %s256 = smul.addr %s255, 8
          %s257 = scalar_lea.vmem %s3, %s256
        $region32: #{tpu_custom_call.1} parent=19 // pred_fallthru
          _
      $region20: #{tpu_custom_call.1} parent=5 // pred_fallthru
        _
      %p258 = scmp.le.s32.totalorder 1, %s21
      %p259 = scmp.lt.s32.totalorder %s21, 3
      %p260 = pnand %p258, %p259
      %p261 = pneg %p260
      // Predicated region
      $region33: #{tpu_custom_call.1} parent=5 // pred_check
        _
      $region34: #{tpu_custom_call.1} parent=5 // pred_check_branch
        %263 = sbr.rel (%p260) target = $region36
      $region35: #{tpu_custom_call.1} parent=5 // pred_region
        %s264 = ssub.s32 %s21, 1
        %s265 = sand.u32 %s97, 1
        %s266 = scalar_lea.sflag [#allocation3], %s265
        %s267 = sand.u32 %s97, 1
        %s268 = smul.addr %s267, 32
        %s269 = scalar_lea.vmem [#allocation2], %s268
        // Predicated region
        $region37: #{tpu_custom_call.1} parent=35 // pred_check
          %p270 = pneg %p110
        $region38: #{tpu_custom_call.1} parent=35 // pred_check_branch
          %272 = sbr.rel (%p270) target = $region40
        $region39: #{tpu_custom_call.1} parent=35 // pred_region
          %273 = dma.done %s266, 512
        $region40: #{tpu_custom_call.1} parent=35 // pred_fallthru
          _
        %p274 = pneg %p54
        %p275 = pneg %p51
        %p276 = scmp.lt.s32.totalorder %s30, 1
        %s277 = scalar_select %p276, %s30, 1
        %p278 = scmp.lt.s32.totalorder %s31, 0
        %s279 = scalar_select %p278, %s31, 0
        %s280 = sadd.s32 %s279, %s277
        %s281 = smul.addr %s280, 8
        %s282 = scalar_lea.vmem %s1, %s281
        %p283 = pneg %p82
        %p284 = pneg %p79
        %s285 = sand.u32 %s97, 1
        %s286 = scalar_lea.sflag [#allocation3], %s285
        %s287 = sand.u32 %s97, 1
        %s288 = smul.addr %s287, 32
        %s289 = scalar_lea.vmem [#allocation2], %s288
        %p290 = pneg %p110
        %p291 = pneg %p107
        %p292 = scmp.lt.s32.totalorder %s30, 1
        %s293 = scalar_select %p292, %s30, 1
        %p294 = scmp.lt.s32.totalorder %s31, 0
        %s295 = scalar_select %p294, %s31, 0
        %s296 = sadd.s32 %s295, %s293
        %s297 = smul.addr %s296, 8
        %s298 = scalar_lea.vmem %s3, %s297
        %p299 = pneg %p138
        %p300 = pneg %p135
        %p301 = pneg %p166
        %p302 = pneg %p163
        %s303 = sand.u32 %s153, 1
        %s304 = scalar_lea.sflag [#allocation4], %s303
        %s305 = sand.u32 %s153, 1
        %s306 = smul.addr %s305, 32
        %s307 = scalar_lea.vmem [#allocation5], %s306
        %p308 = pneg %p194
        %p309 = pneg %p191
        %s310 = sand.u32 %s181, 1
        %s311 = scalar_lea.sflag [#allocation7], %s310
        %s312 = sand.u32 %s181, 1
        %s313 = smul.addr %s312, 8
        %s314 = scalar_lea.vmem [#allocation6], %s313
        %p315 = scmp.lt.s32.totalorder %s30, 1
        %s316 = scalar_select %p315, %s30, 1
        %p317 = scmp.lt.s32.totalorder %s31, 0
        %s318 = scalar_select %p317, %s31, 0
        %s319 = sadd.s32 %s318, %s316
        %s320 = smul.addr %s319, 8
        %s321 = scalar_lea.vmem %s1, %s320
        %p322 = scmp.lt.s32.totalorder %s30, 1
        %s323 = scalar_select %p322, %s30, 1
        %p324 = scmp.lt.s32.totalorder %s31, 0
        %s325 = scalar_select %p324, %s31, 0
        %s326 = sadd.s32 %s325, %s323
        %s327 = smul.addr %s326, 8
        %s328 = scalar_lea.vmem %s3, %s327
        %v329 = vld [vmem:[%s321] sm:$0xff]
        %v330 = vcvt.s32.f32 %v329
        %v331 = vld [vmem:[%s0] sm:$0x1]
        %333 = vset.pattern.permute.xlu0 0
        %334 = vperm.xlu0 %333, %v330
        %v335 = vpop.permute.xlu0 %334
        %v338 = vlaneseq
        %v339 = vshrl.u32 %v338, 7
        %v340 = vsub.s32 0, %v339
        %v341 = vrot.slane %v331, %v340
        %v343 = vmul.f32 %v335, %v341
        %v344 = vand.u32 2147483647, %v343
        %vm345 = vcmp.le.f32.partialorder %v344, 0.7853982
        %vm346 = vcmp.lt.s32.totalorder %v343, 0
        %v347 = vand.u32 %v343, 2139095040
        %v348 = vshrl.u32 %v347, 23
        %v349 = vsub.s32 %v348, 127
        %v350 = vand.u32 2147483647, %v343
        %v351 = vand.u32 %v350, 8388607
        %v352 = vor.u32 %v351, 8388608
        %v353 = vsub.s32 0, %v352
        %v354 = vadd.s32 %v349, 1
        %vm355 = vcmp.gt.s32.totalorder %v354, 0
        %v356 = vsel %vm355, %v354, 0
        %v357 = vshrl.u32 %v356, 5
        %v358 = vand.u32 %v356, 31
        %v359 = vsub.s32 32, %v358
        %v360 = vshrl.u32 683565275, %v359
        %v361 = vshll.u32 683565275, %v358
        %v362 = vshrl.u32 2475754826, %v359
        %v363 = vor.u32 %v361, %v362
        %v364 = vshll.u32 2475754826, %v358
        %v365 = vshrl.u32 2131351028, %v359
        %v366 = vor.u32 %v364, %v365
        %v367 = vshll.u32 2131351028, %v358
        %v368 = vshrl.u32 2102212464, %v359
        %v369 = vor.u32 %v367, %v368
        %v370 = vshll.u32 2102212464, %v358
        %v371 = vshrl.u32 920167782, %v359
        %v372 = vor.u32 %v370, %v371
        %v373 = vshll.u32 920167782, %v358
        %v374 = vshrl.u32 1326507024, %v359
        %v375 = vor.u32 %v373, %v374
        %vm376 = vcmp.lt.s32.totalorder %v357, 1
        %vm377 = vcmp.lt.s32.totalorder %v357, 2
        %vm378 = vcmp.lt.s32.totalorder %v357, 3
        %vm379 = vcmp.lt.s32.totalorder %v357, 4
        %v380 = vsel %vm376, %v360, %v363
        %v381 = vsel %vm379, %v369, 2102212464
        %v382 = vsel %vm378, %v366, %v381
        %v383 = vsel %vm377, %v380, %v382
        %v384 = vsel %vm376, %v363, %v366
        %v385 = vsel %vm379, %v372, 920167782
        %v386 = vsel %vm378, %v369, %v385
        %v387 = vsel %vm377, %v384, %v386
        %v388 = vsel %vm376, %v366, %v369
        %v389 = vsel %vm379, %v375, 1326507024
        %v390 = vsel %vm378, %v372, %v389
        %v391 = vsel %vm377, %v388, %v390
        %v392 = vshll.u32 %v352, 8
        %v393 = vmul.u32.u64.compose %v392, %v391
        %v394 = vextract.low.u32 %v393
        %v395 = vextract.high.u32 %v393
        %v396 = vmul.u32.u64.compose %v392, %v387
        %v397 = vextract.low.u32 %v396
        %v398 = vextract.high.u32 %v396
        %v399 = vmul.u32 %v392, %v383
        %v400 = vadd.s32 %v395, %v397
        %vm401 = vc.u32 %v395, %v397
        %v402 = vadd.s32 %v398, 1
        %v403 = vsel %vm401, %v402, %v398
        %v404 = vadd.s32 %v399, %v403
        %v405 = vadd.s32 %v404, 536870912
        %v406 = vshrl.u32 %v405, 30
        %v407 = vshll.u32 %v406, 30
        %v408 = vsub.s32 %v404, %v407
        %vm409 = vcmp.lt.s32.totalorder %v408, 0
        %v410 = vsub.s32 0, %v408
        %v411 = vsel %vm409, %v410, %v408
        %v412 = vclz %v411
        %v413 = vsub.s32 %v412, 2
        %vm414 = vcmp.gt.s32.totalorder 0, %v413
        %v415 = vsel %vm414, 0, %v413
        %v416 = vsub.s32 32, %v415
        %v417 = vshll.u32 %v408, %v415
        %v418 = vshrl.u32 %v400, %v416
        %v419 = vor.u32 %v417, %v418
        %v420 = vsub.s32 4294967266, %v415
        %v421 = vadd.s32 %v420, 127
        %v422 = vshll.u32 %v421, 23
        %v423 = vor.u32 4788187, %v422
        %v424 = vand.u32 2147483647, %v423
        %v426 = vcvt.s32.f32 %v419
        %v427 = vmul.f32 %v426, %v424
        %v428 = vxor.u32 %v427, 2147483648
        %v429 = vsel %vm346, %v428, %v427
        %v430 = vsub.s32 4, %v406
        %v431 = vsel %vm346, %v430, %v406
        %v432 = vsel %vm345, %v343, %v429
        %v433 = vsel %vm345, 0, %v431
        %v434 = vcosq.f32.pop %v432
        %v435 = vsinq.f32.pop %v432
        %vm436 = vweird.f32 %v343
        %v437 = vand.u32 %v433, 3
        %vm438 = vcmp.lt.s32.totalorder %v437, 2
        %vm439 = vcmp.eq.s32.totalorder %v437, 0
        %v440 = vxor.u32 %v435, 2147483648
        %v441 = vsel %vm439, %v434, %v440
        %vm442 = vcmp.eq.s32.totalorder %v437, 2
        %v443 = vxor.u32 %v434, 2147483648
        %v444 = vsel %vm442, %v443, %v435
        %v445 = vsel %vm438, %v441, %v444
        %v446 = vsel %vm436, nan, %v445
        %v447 = vand.u32 2147483647, %v343
        %vm448 = vcmp.le.f32.partialorder %v447, 0.7853982
        %vm449 = vcmp.lt.s32.totalorder %v343, 0
        %v450 = vand.u32 %v343, 2139095040
        %v451 = vshrl.u32 %v450, 23
        %v452 = vsub.s32 %v451, 127
        %v453 = vand.u32 2147483647, %v343
        %v454 = vand.u32 %v453, 8388607
        %v455 = vor.u32 %v454, 8388608
        %v456 = vsub.s32 0, %v455
        %v457 = vadd.s32 %v452, 1
        %vm458 = vcmp.gt.s32.totalorder %v457, 0
        %v459 = vsel %vm458, %v457, 0
        %v460 = vshrl.u32 %v459, 5
        %v461 = vand.u32 %v459, 31
        %v462 = vsub.s32 32, %v461
        %v463 = vshrl.u32 683565275, %v462
        %v464 = vshll.u32 683565275, %v461
        %v465 = vshrl.u32 2475754826, %v462
        %v466 = vor.u32 %v464, %v465
        %v467 = vshll.u32 2475754826, %v461
        %v468 = vshrl.u32 2131351028, %v462
        %v469 = vor.u32 %v467, %v468
        %v470 = vshll.u32 2131351028, %v461
        %v471 = vshrl.u32 2102212464, %v462
        %v472 = vor.u32 %v470, %v471
        %v473 = vshll.u32 2102212464, %v461
        %v474 = vshrl.u32 920167782, %v462
        %v475 = vor.u32 %v473, %v474
        %v476 = vshll.u32 920167782, %v461
        %v477 = vshrl.u32 1326507024, %v462
        %v478 = vor.u32 %v476, %v477
        %vm479 = vcmp.lt.s32.totalorder %v460, 1
        %vm480 = vcmp.lt.s32.totalorder %v460, 2
        %vm481 = vcmp.lt.s32.totalorder %v460, 3
        %vm482 = vcmp.lt.s32.totalorder %v460, 4
        %v483 = vsel %vm479, %v463, %v466
        %v484 = vsel %vm482, %v472, 2102212464
        %v485 = vsel %vm481, %v469, %v484
        %v486 = vsel %vm480, %v483, %v485
        %v487 = vsel %vm479, %v466, %v469
        %v488 = vsel %vm482, %v475, 920167782
        %v489 = vsel %vm481, %v472, %v488
        %v490 = vsel %vm480, %v487, %v489
        %v491 = vsel %vm479, %v469, %v472
        %v492 = vsel %vm482, %v478, 1326507024
        %v493 = vsel %vm481, %v475, %v492
        %v494 = vsel %vm480, %v491, %v493
        %v495 = vshll.u32 %v455, 8
        %v496 = vmul.u32.u64.compose %v495, %v494
        %v497 = vextract.low.u32 %v496
        %v498 = vextract.high.u32 %v496
        %v499 = vmul.u32.u64.compose %v495, %v490
        %v500 = vextract.low.u32 %v499
        %v501 = vextract.high.u32 %v499
        %v502 = vmul.u32 %v495, %v486
        %v503 = vadd.s32 %v498, %v500
        %vm504 = vc.u32 %v498, %v500
        %v505 = vadd.s32 %v501, 1
        %v506 = vsel %vm504, %v505, %v501
        %v507 = vadd.s32 %v502, %v506
        %v508 = vadd.s32 %v507, 536870912
        %v509 = vshrl.u32 %v508, 30
        %v510 = vshll.u32 %v509, 30
        %v511 = vsub.s32 %v507, %v510
        %vm512 = vcmp.lt.s32.totalorder %v511, 0
        %v513 = vsub.s32 0, %v511
        %v514 = vsel %vm512, %v513, %v511
        %v515 = vclz %v514
        %v516 = vsub.s32 %v515, 2
        %vm517 = vcmp.gt.s32.totalorder 0, %v516
        %v518 = vsel %vm517, 0, %v516
        %v519 = vsub.s32 32, %v518
        %v520 = vshll.u32 %v511, %v518
        %v521 = vshrl.u32 %v503, %v519
        %v522 = vor.u32 %v520, %v521
        %v523 = vsub.s32 4294967266, %v518
        %v524 = vadd.s32 %v523, 127
        %v525 = vshll.u32 %v524, 23
        %v526 = vor.u32 4788187, %v525
        %v527 = vand.u32 2147483647, %v526
        %v529 = vcvt.s32.f32 %v522
        %v530 = vmul.f32 %v529, %v527
        %v531 = vxor.u32 %v530, 2147483648
        %v532 = vsel %vm449, %v531, %v530
        %v533 = vsub.s32 4, %v509
        %v534 = vsel %vm449, %v533, %v509
        %v535 = vsel %vm448, %v343, %v532
        %v536 = vsel %vm448, 0, %v534
        %v537 = vcosq.f32.pop %v535
        %v538 = vsinq.f32.pop %v535
        %vm539 = vweird.f32 %v343
        %v540 = vadd.s32 %v536, 3
        %v541 = vand.u32 %v540, 3
        %vm542 = vcmp.lt.s32.totalorder %v541, 2
        %vm543 = vcmp.eq.s32.totalorder %v541, 0
        %v544 = vxor.u32 %v538, 2147483648
        %v545 = vsel %vm543, %v537, %v544
        %vm546 = vcmp.eq.s32.totalorder %v541, 2
        %v547 = vxor.u32 %v537, 2147483648
        %v548 = vsel %vm546, %v547, %v538
        %v549 = vsel %vm542, %v545, %v548
        %v550 = vsel %vm539, nan, %v549
        %552 = vrot.lane.b32.xlu0 %v446, 16
        %v553 = vpop.permute.xlu0 %552
        %vm555 = vcmask 130048
        %v556 = vsel %vm555, %v446, %v553
        %v557 = vsub.f32 0.0, %v550
        %559 = vrot.lane.b32.xlu0 %v550, 16
        %v560 = vpop.permute.xlu0 %559
        %v562 = vsel %vm555, %v557, %v560
        %v563 = vld [vmem:[%s269] sm:$0xff]
        %v564 = vld [vmem:[%s269 + $0x8] sm:$0xff]
        %v565 = vld [vmem:[%s269 + $0x10] sm:$0xff]
        %v566 = vld [vmem:[%s269 + $0x18] sm:$0xff]
        %571 = vrot.lane.b32.xlu0 %v563, 112
        %v572 = vpop.permute.xlu0 %571
        %573 = vrot.lane.b32.xlu0 %v564, 112
        %v574 = vpop.permute.xlu0 %573
        %575 = vrot.lane.b32.xlu0 %v565, 112
        %v576 = vpop.permute.xlu0 %575
        %577 = vrot.lane.b32.xlu0 %v566, 112
        %v578 = vpop.permute.xlu0 %577
        %583 = vrot.lane.b32.xlu0 %v563, 16
        %v584 = vpop.permute.xlu0 %583
        %585 = vrot.lane.b32.xlu0 %v564, 16
        %v586 = vpop.permute.xlu0 %585
        %587 = vrot.lane.b32.xlu0 %v565, 16
        %v588 = vpop.permute.xlu0 %587
        %589 = vrot.lane.b32.xlu0 %v566, 16
        %v590 = vpop.permute.xlu0 %589
        %v595 = vsel %vm555, %v572, %v584
        %v596 = vsel %vm555, %v574, %v586
        %v597 = vsel %vm555, %v576, %v588
        %v598 = vsel %vm555, %v578, %v590
        %v599 = vmul.f32 %v563, %v556
        %v600 = vmul.f32 %v564, %v556
        %v601 = vmul.f32 %v565, %v556
        %v602 = vmul.f32 %v566, %v556
        %v603 = vmul.f32 %v595, %v562
        %v604 = vmul.f32 %v596, %v562
        %v605 = vmul.f32 %v597, %v562
        %v606 = vmul.f32 %v598, %v562
        %v607 = vadd.f32 %v599, %v603
        %v608 = vadd.f32 %v600, %v604
        %v609 = vadd.f32 %v601, %v605
        %v610 = vadd.f32 %v602, %v606
        %vm611 = vcmask 261120
        %612 = vst.msk [vmem:[%s307] sm:$0xff] %vm611, %v607
        %613 = vst.msk [vmem:[%s307 + $0x8] sm:$0xff] %vm611, %v608
        %614 = vst.msk [vmem:[%s307 + $0x10] sm:$0xff] %vm611, %v609
        %615 = vst.msk [vmem:[%s307 + $0x18] sm:$0xff] %vm611, %v610
        %v616 = vld [vmem:[%s328] sm:$0xff]
        %618 = vrot.lane.b32.xlu0 %v616, 112
        %v619 = vpop.permute.xlu0 %618
        %621 = vrot.lane.b32.xlu0 %v616, 16
        %v622 = vpop.permute.xlu0 %621
        %v624 = vsel %vm555, %v619, %v622
        %v625 = vmul.f32 %v616, %v556
        %v626 = vmul.f32 %v624, %v562
        %v627 = vadd.f32 %v625, %v626
        %628 = vst.msk [vmem:[%s314] sm:$0xff] %vm611, %v627
        %s629 = sand.u32 %s153, 1
        %s630 = scalar_lea.sflag [#allocation4], %s629
        %s631 = sand.u32 %s153, 1
        %s632 = smul.addr %s631, 32
        %s633 = scalar_lea.vmem [#allocation5], %s632
        %s634 = sand.u32 %s181, 1
        %s635 = scalar_lea.sflag [#allocation7], %s634
        %s636 = sand.u32 %s181, 1
        %s637 = smul.addr %s636, 8
        %s638 = scalar_lea.vmem [#allocation6], %s637
        // Predicated region
        $region41: #{tpu_custom_call.1} parent=35 // pred_check
          %p639 = pneg %p163
        $region42: #{tpu_custom_call.1} parent=35 // pred_check_branch
          %641 = sbr.rel (%p639) target = $region44
        $region43: #{tpu_custom_call.1} parent=35 // pred_region
          %s643 = ssub.s32 512, 512
          %644 = vsyncadd %s630, %s643
          %s645 = smul.addr %s30, 4
          %s646 = sadd.s32 %s31, %s645
          %s647 = smul.addr %s646, 128
          %s648 = scalar_lea.hbm %s4, %s647
          %s649 = sshll.u32 %s633, 4
          %s650 = int_to_ptr.vmem [resolvable:$true] %s649
          %655 = dma.vmem_to_hbm [thread:$0]  %s650, 512, %s648, %s630, 128, 128, 8
        $region44: #{tpu_custom_call.1} parent=35 // pred_fallthru
          _
        // Predicated region
        $region45: #{tpu_custom_call.1} parent=35 // pred_check
          %p656 = pneg %p191
        $region46: #{tpu_custom_call.1} parent=35 // pred_check_branch
          %658 = sbr.rel (%p656) target = $region48
        $region47: #{tpu_custom_call.1} parent=35 // pred_region
          %s660 = ssub.s32 128, 128
          %661 = vsyncadd %s635, %s660
          %s662 = sadd.s32 %s31, %s30
          %s663 = smul.addr %s662, 128
          %s664 = scalar_lea.hbm %s5, %s663
          %s666 = sshll.u32 %s638, 4
          %s667 = int_to_ptr.vmem [resolvable:$true] %s666
          %669 = dma.vmem_to_hbm [thread:$0]  %s667, 128, %s664, %s635
        $region48: #{tpu_custom_call.1} parent=35 // pred_fallthru
          _
      $region36: #{tpu_custom_call.1} parent=5 // pred_fallthru
        _
      %p670 = scmp.le.s32.totalorder 2, %s21
      // Predicated region
      $region49: #{tpu_custom_call.1} parent=5 // pred_check
        %p671 = pneg %p670
      $region50: #{tpu_custom_call.1} parent=5 // pred_check_branch
        %673 = sbr.rel (%p671) target = $region52
      $region51: #{tpu_custom_call.1} parent=5 // pred_region
        %s674 = ssub.s32 %s21, 2
        // Predicated region
        $region53: #{tpu_custom_call.1} parent=51 // pred_check
          %p675 = pneg %p169
        $region54: #{tpu_custom_call.1} parent=51 // pred_check_branch
          %677 = sbr.rel (%p675) target = $region56
        $region55: #{tpu_custom_call.1} parent=51 // pred_region
          %s678 = sand.u32 %s154, 1
          %s679 = scalar_lea.sflag [#allocation4], %s678
          %s680 = sand.u32 %s154, 1
          %s681 = smul.addr %s680, 32
          %s682 = scalar_lea.vmem [#allocation5], %s681
          %683 = dma.done %s679, 512
        $region56: #{tpu_custom_call.1} parent=51 // pred_fallthru
          _
        // Predicated region
        $region57: #{tpu_custom_call.1} parent=51 // pred_check
          %p684 = pneg %p197
        $region58: #{tpu_custom_call.1} parent=51 // pred_check_branch
          %686 = sbr.rel (%p684) target = $region60
        $region59: #{tpu_custom_call.1} parent=51 // pred_region
          %s687 = sand.u32 %s182, 1
          %s688 = scalar_lea.sflag [#allocation7], %s687
          %s689 = sand.u32 %s182, 1
          %s690 = smul.addr %s689, 8
          %s691 = scalar_lea.vmem [#allocation6], %s690
          %692 = dma.done %s688, 128
        $region60: #{tpu_custom_call.1} parent=51 // pred_fallthru
          _
      $region52: #{tpu_custom_call.1} parent=5 // pred_fallthru
        _
    $region6: #{tpu_custom_call.1} parent=1 // loop_footer
      %s25 = sadd.s32 1, %s21
    $region7: #{tpu_custom_call.1} parent=1 // loop_footer_branch
      %20 = sbr.rel target = $region3
    $region8: #{tpu_custom_call.1} parent=1 // loop_exit
      _
    %693 = vsyncpa [#allocation3], 1
    %s694 = scalar_lea.sflag [#allocation3], 1
    %695 = vsyncpa %s694, 1
    %696 = vsyncpa [#allocation4], 1
    %s697 = scalar_lea.sflag [#allocation4], 1
    %698 = vsyncpa %s697, 1
    %699 = vsyncpa [#allocation7], 1
    %s700 = scalar_lea.sflag [#allocation7], 1
    %701 = vsyncpa %s700, 1

</llo_original>
